<compile_context>
chip_gen: v7x
topology: tpu7x:2x2x1
jax: 0.10.0
libtpu: 0.0.40
codegen_flags: <defaults>
</compile_context>

<pallas_src>
import math
import functools

import jax
import jax.numpy as jnp
from jax import lax
from jax.experimental import pallas as pl
from jax.experimental.pallas import tpu as pltpu


def _round_up(x, m):
    return ((x + m - 1) // m) * m


def _vmem_capacity_bytes():
    try:
        return int(pltpu.get_tpu_info().vmem_capacity_bytes)
    except Exception:
        return 64 * 1024 * 1024  # v7x-safe fallback


def _pick_batch_tile(B, in_dim, hidden, out_dim, x_item, out_item, weight_bytes, vmem_cap):
    # Per-row working set: double-buffered x & out tiles + f32 intermediates.
    row_bytes = 2 * in_dim * x_item + 2 * out_dim * out_item + (4 * hidden + 2 * out_dim) * 4
    budget = max(int(0.40 * vmem_cap) - 2 * weight_bytes, 4 * 1024 * 1024)
    tb = _round_up(B, 8)          # start from "whole batch in one tile" (grid=(1,))
    while tb > 8 and tb * row_bytes > budget:
        tb = max(8, _round_up(tb // 2, 8))
    return tb


def linear_encoder_kernel(x_ref, w1_0_ref, dw1_ref, w3n_s_ref, w30_s_ref, o_ref, *,
                          compute_dtype):
    """One batch tile: relu(z) @ (s*W3_new)^T + (relu'(z)*u) @ (s*W3_0)^T."""
    x = x_ref[...]                                        # (TB, in)
    if compute_dtype is not None:
        x = x.astype(compute_dtype)

    contract_last = (((1,), (1,)), ((), ()))              # a @ b^T without materializing b.T

    z = lax.dot_general(x, w1_0_ref[...], dimension_numbers=contract_last,
                        preferred_element_type=jnp.float32)       # (TB, H)
    u = lax.dot_general(x, dw1_ref[...], dimension_numbers=contract_last,
                        preferred_element_type=jnp.float32)       # (TB, H)

    pos = z > 0                                           # relu'(z): subgradient 0 at z == 0
    h_new = jnp.where(pos, z, 0.0)                        # relu(z)
    h_jvp = jnp.where(pos, u, 0.0)                        # relu'(z) * u
    if compute_dtype is not None:
        h_new = h_new.astype(compute_dtype)
        h_jvp = h_jvp.astype(compute_dtype)

    out = lax.dot_general(h_new, w3n_s_ref[...], dimension_numbers=contract_last,
                          preferred_element_type=jnp.float32)     # (TB, out)
    out = out + lax.dot_general(h_jvp, w30_s_ref[...], dimension_numbers=contract_last,
                                preferred_element_type=jnp.float32)
    o_ref[...] = out.astype(o_ref.dtype)


_SINGLE_BUFFER_WEIGHTS_OK = None   # cache: does this jax build accept pl.Buffered(1)?


def linear_encoder_forward(x, w1_0, w3_0, w1_new, w3_new, *,
                           batch_tile=None, compute_dtype=None):
    """f(x) = model0(x) + Jf(x; phi0) @ (phi - phi0)  (exact, analytic JVP)."""
    B, in_dim = x.shape
    hidden, in_dim_w = w1_0.shape
    out_dim, hidden_w = w3_0.shape
    assert in_dim_w == in_dim and hidden_w == hidden
    assert w1_new.shape == (hidden, in_dim) and w3_new.shape == (out_dim, hidden)

    scale = 1.0 / math.sqrt(hidden)                       # DenseEncoder1Layer.scale
    wdt = compute_dtype if compute_dtype is not None else w1_0.dtype

    # ---- weight prep hoisted out of the grid loop (one-off tiny XLA ops) ----
    w1_0c = w1_0.astype(wdt)                                        # (H, in)
    dw1 = (w1_new - w1_0).astype(wdt)                               # (H, in)
    w3n_s = (scale * w3_new.astype(jnp.float32)).astype(wdt)        # (out, H), scale folded
    w30_s = (scale * w3_0.astype(jnp.float32)).astype(wdt)          # (out, H), scale folded

    x_item = x.dtype.itemsize
    out_item = x.dtype.itemsize
    w_item = jnp.dtype(wdt).itemsize
    weight_bytes = 2 * hidden * in_dim * w_item + 2 * out_dim * hidden * w_item

    vmem_cap = _vmem_capacity_bytes()
    if batch_tile is None:
        batch_tile = _pick_batch_tile(B, in_dim, hidden, out_dim,
                                      x_item, out_item, weight_bytes, vmem_cap)
    tb = max(8, min(_round_up(batch_tile, 8), _round_up(B, 8)))
    grid = (pl.cdiv(B, tb),)

    # Scoped-VMEM limit derived from the estimate (never clamped below it), capped at the
    # physical capacity of the current generation.
    est = (2 * weight_bytes                               # weight slabs (2x covers fallback)
           + 2 * tb * in_dim * x_item                     # x tile, double-buffered
           + 2 * tb * out_dim * out_item                  # out tile, double-buffered
           + tb * (4 * hidden + 2 * out_dim) * 4)         # f32 intermediates
    vmem_limit = int(min(max(int(1.5 * est) + (4 << 20), 16 << 20), vmem_cap))

    kern = functools.partial(linear_encoder_kernel, compute_dtype=compute_dtype)

    def call(single_buffer_weights):
        wkw = {"pipeline_mode": pl.Buffered(1)} if single_buffer_weights else {}
        return pl.pallas_call(
            kern,
            grid=grid,
            out_shape=jax.ShapeDtypeStruct((B, out_dim), x.dtype),
            in_specs=[
                pl.BlockSpec((tb, in_dim), lambda i: (i, 0)),              # x: batch-tiled
                pl.BlockSpec((hidden, in_dim), lambda i: (0, 0), **wkw),   # W1_0: resident
                pl.BlockSpec((hidden, in_dim), lambda i: (0, 0), **wkw),   # dW1: resident
                pl.BlockSpec((out_dim, hidden), lambda i: (0, 0), **wkw),  # scale*W3_new
                pl.BlockSpec((out_dim, hidden), lambda i: (0, 0), **wkw),  # scale*W3_0
            ],
            # Output stored unpadded: masked vst on a tiny (tb, out_dim) tile beats a
            # 128-lane-padded writeback + wrapper slice by ~64x HBM bytes at out_dim=2.
            out_specs=pl.BlockSpec((tb, out_dim), lambda i: (i, 0)),
            compiler_params=pltpu.CompilerParams(
                # TODO(synk): on v7x verify the batch axis actually shards across both
                # TensorCores; if not, switch to pltpu.CORE_PARALLEL / core_map.
                dimension_semantics=("parallel",),
                vmem_limit_bytes=vmem_limit,
            ),
        )(x, w1_0c, dw1, w3n_s, w30_s)

    global _SINGLE_BUFFER_WEIGHTS_OK
    if _SINGLE_BUFFER_WEIGHTS_OK is None:
        try:
            out = call(True)
            _SINGLE_BUFFER_WEIGHTS_OK = True
            return out
        except Exception:
            # pipeline_mode=pl.Buffered(1) not supported on this jax build; fall back to
            # default double-buffered (still correct, just 2x resident-weight VMEM).
            _SINGLE_BUFFER_WEIGHTS_OK = False
    return call(_SINGLE_BUFFER_WEIGHTS_OK)


if __name__ == "__main__":
    key = jax.random.PRNGKey(0)
    B, in_dim, hidden, out_dim = 64, 16, 32, 2
    k1, k2, k3, kx = jax.random.split(key, 4)

    # phi0: frozen model0 weights. (DenseEncoder1Layer init uses normal_ for linear1 and
    # zeros_ for linear3; a small normal is used for linear3 here so every matmul path in
    # the kernel is exercised — deterministic synthetic init.)
    w1_0 = jax.random.normal(k1, (hidden, in_dim), jnp.float32)
    w3_0 = 0.1 * jax.random.normal(k2, (out_dim, hidden), jnp.float32)

    # phi: current trainable flattened parameter vector (param_vec_flatten), unflattened
    # into (W1_new, W3_new) with a small perturbation.
    k4, k5 = jax.random.split(k3)
    w1_new = w1_0 + 0.05 * jax.random.normal(k4, (hidden, in_dim), jnp.float32)
    w3_new = w3_0 + 0.05 * jax.random.normal(k5, (out_dim, hidden), jnp.float32)

    x = jax.random.normal(kx, (B, in_dim), jnp.float32)

    # Default path: whole batch resident -> grid=(1,) (no small tiles).
    out = jax.block_until_ready(linear_encoder_forward(x, w1_0, w3_0, w1_new, w3_new))
    # Forced-tiled path: batch_tile=32 -> 2 grid steps, exercises the pipelined loop.
    out_tiled = jax.block_until_ready(
        linear_encoder_forward(x, w1_0, w3_0, w1_new, w3_new, batch_tile=32))

    # Reference: explicit per-sample Jacobian w.r.t. the flattened parameter vector,
    # exactly mirroring LinearEncoder.forward (model0(x) + Jf(x; phi0) @ dphi).
    scale = 1.0 / math.sqrt(hidden)
    phi0 = jnp.concatenate([w1_0.ravel(), w3_0.ravel()])
    phi = jnp.concatenate([w1_new.ravel(), w3_new.ravel()])

    def model0_flat(pvec, xb):
        w1 = pvec[: hidden * in_dim].reshape(hidden, in_dim)
        w3 = pvec[hidden * in_dim:].reshape(out_dim, hidden)
        return (w3 @ jnp.maximum(w1 @ xb, 0.0)) * scale

    out1 = jax.vmap(lambda xb: model0_flat(phi0, xb))(x)                    # model0(x)
    jac = jax.vmap(lambda xb: jax.jacrev(model0_flat)(phi0, xb))(x)         # (B, out, n_params)
    ref = out1 + jnp.einsum("bop,p->bo", jac, phi - phi0)

    assert out.shape == (B, out_dim)
    assert jnp.allclose(out, ref, atol=1e-4, rtol=1e-4), (out, ref)
    assert jnp.allclose(out_tiled, ref, atol=1e-4, rtol=1e-4), (out_tiled, ref)
    print("KERNEL_OK")
</pallas_src>

<mosaic_0001>
module attributes {stable_mosaic.version = 11 : i64} {
  func.func @linear_encoder_kernel(%arg0: i32, %arg1: memref<64x16xf32, #tpu.memory_space<vmem>>, %arg2: memref<32x16xf32, #tpu.memory_space<vmem>>, %arg3: memref<32x16xf32, #tpu.memory_space<vmem>>, %arg4: memref<2x32xf32, #tpu.memory_space<vmem>>, %arg5: memref<2x32xf32, #tpu.memory_space<vmem>>, %arg6: memref<64x2xf32, #tpu.memory_space<vmem>>) attributes {dimension_semantics = [#tpu.dimension_semantics<parallel>], iteration_bounds = array<i64: 1>, scalar_prefetch = 0 : i64, scratch_operands = 0 : i64, tpu.core_type = #tpu.core_type<tc>, window_params = [{transform_indices = @transform_0, window_bounds = array<i64: 64, 16>}, {pipeline_mode = #tpu.pipeline_mode<synchronous>, transform_indices = @transform_1, window_bounds = array<i64: 32, 16>}, {pipeline_mode = #tpu.pipeline_mode<synchronous>, transform_indices = @transform_2, window_bounds = array<i64: 32, 16>}, {pipeline_mode = #tpu.pipeline_mode<synchronous>, transform_indices = @transform_3, window_bounds = array<i64: 2, 32>}, {pipeline_mode = #tpu.pipeline_mode<synchronous>, transform_indices = @transform_4, window_bounds = array<i64: 2, 32>}, {transform_indices = @transform_5, window_bounds = array<i64: 64, 2>}]} {
    %c0 = arith.constant 0 : index
    %c0_0 = arith.constant 0 : index
    %0 = vector.load %arg1[%c0, %c0_0] : memref<64x16xf32, #tpu.memory_space<vmem>>, vector<64x16xf32>
    %c0_1 = arith.constant 0 : index
    %c0_2 = arith.constant 0 : index
    %1 = vector.load %arg2[%c0_1, %c0_2] : memref<32x16xf32, #tpu.memory_space<vmem>>, vector<32x16xf32>
    %cst = arith.constant dense<0.000000e+00> : vector<64x32xf32>
    %2 = tpu.matmul %0, %1, %cst {dimension_numbers = #tpu.dot_dimension_numbers<[1], [1], [0], [0], [0, 0, 1, 0], [], []>} : vector<64x16xf32>, vector<32x16xf32>, vector<64x32xf32> -> vector<64x32xf32>
    %c0_3 = arith.constant 0 : index
    %c0_4 = arith.constant 0 : index
    %3 = vector.load %arg3[%c0_3, %c0_4] : memref<32x16xf32, #tpu.memory_space<vmem>>, vector<32x16xf32>
    %cst_5 = arith.constant dense<0.000000e+00> : vector<64x32xf32>
    %4 = tpu.matmul %0, %3, %cst_5 {dimension_numbers = #tpu.dot_dimension_numbers<[1], [1], [0], [0], [0, 0, 1, 0], [], []>} : vector<64x16xf32>, vector<32x16xf32>, vector<64x32xf32> -> vector<64x32xf32>
    %cst_6 = arith.constant 0.000000e+00 : f32
    %5 = vector.broadcast %cst_6 : f32 to vector<64x32xf32>
    %6 = arith.cmpf ogt, %2, %5 : vector<64x32xf32>
    %cst_7 = arith.constant 0.000000e+00 : f32
    %7 = vector.broadcast %cst_7 : f32 to vector<64x32xf32>
    %8 = arith.select %6, %2, %7 : vector<64x32xi1>, vector<64x32xf32>
    %cst_8 = arith.constant 0.000000e+00 : f32
    %9 = vector.broadcast %cst_8 : f32 to vector<64x32xf32>
    %10 = arith.select %6, %4, %9 : vector<64x32xi1>, vector<64x32xf32>
    %c0_9 = arith.constant 0 : index
    %c0_10 = arith.constant 0 : index
    %11 = vector.load %arg4[%c0_9, %c0_10] : memref<2x32xf32, #tpu.memory_space<vmem>>, vector<2x32xf32>
    %cst_11 = arith.constant dense<0.000000e+00> : vector<64x2xf32>
    %12 = tpu.matmul %8, %11, %cst_11 {dimension_numbers = #tpu.dot_dimension_numbers<[1], [1], [0], [0], [0, 0, 1, 0], [], []>} : vector<64x32xf32>, vector<2x32xf32>, vector<64x2xf32> -> vector<64x2xf32>
    %c0_12 = arith.constant 0 : index
    %c0_13 = arith.constant 0 : index
    %13 = vector.load %arg5[%c0_12, %c0_13] : memref<2x32xf32, #tpu.memory_space<vmem>>, vector<2x32xf32>
    %cst_14 = arith.constant dense<0.000000e+00> : vector<64x2xf32>
    %14 = tpu.matmul %10, %13, %cst_14 {dimension_numbers = #tpu.dot_dimension_numbers<[1], [1], [0], [0], [0, 0, 1, 0], [], []>} : vector<64x32xf32>, vector<2x32xf32>, vector<64x2xf32> -> vector<64x2xf32>
    %15 = arith.addf %12, %14 : vector<64x2xf32>
    %c0_15 = arith.constant 0 : index
    %c0_16 = arith.constant 0 : index
    %16 = vector.load %arg6[%c0_15, %c0_16] : memref<64x2xf32, #tpu.memory_space<vmem>>, vector<64x2xf32>
    tpu.vector_store %arg6[%c0_15, %c0_16], %15 {strides = array<i32>} : memref<64x2xf32, #tpu.memory_space<vmem>>, vector<64x2xf32>,
    return
  }
  func.func @transform_0(%arg0: i32) -> (i32, i32) {
    %c0_i32 = arith.constant 0 : i32
    %c0_i32_0 = arith.constant 0 : i32
    return %arg0, %c0_i32 : i32, i32
  }
  func.func @transform_1(%arg0: i32) -> (i32, i32) {
    %c0_i32 = arith.constant 0 : i32
    %c0_i32_0 = arith.constant 0 : i32
    %c0_i32_1 = arith.constant 0 : i32
    return %c0_i32, %c0_i32_0 : i32, i32
  }
  func.func @transform_2(%arg0: i32) -> (i32, i32) {
    %c0_i32 = arith.constant 0 : i32
    %c0_i32_0 = arith.constant 0 : i32
    %c0_i32_1 = arith.constant 0 : i32
    return %c0_i32, %c0_i32_0 : i32, i32
  }
  func.func @transform_3(%arg0: i32) -> (i32, i32) {
    %c0_i32 = arith.constant 0 : i32
    %c0_i32_0 = arith.constant 0 : i32
    %c0_i32_1 = arith.constant 0 : i32
    return %c0_i32, %c0_i32_0 : i32, i32
  }
  func.func @transform_4(%arg0: i32) -> (i32, i32) {
    %c0_i32 = arith.constant 0 : i32
    %c0_i32_0 = arith.constant 0 : i32
    %c0_i32_1 = arith.constant 0 : i32
    return %c0_i32, %c0_i32_0 : i32, i32
  }
  func.func @transform_5(%arg0: i32) -> (i32, i32) {
    %c0_i32 = arith.constant 0 : i32
    %c0_i32_0 = arith.constant 0 : i32
    return %arg0, %c0_i32 : i32, i32
  }
}

module attributes {stable_mosaic.version = 11 : i64} {
  func.func @linear_encoder_kernel(%arg0: i32, %arg1: memref<64x16xf32, #tpu.memory_space<vmem>>, %arg2: memref<32x16xf32, #tpu.memory_space<vmem>>, %arg3: memref<32x16xf32, #tpu.memory_space<vmem>>, %arg4: memref<2x32xf32, #tpu.memory_space<vmem>>, %arg5: memref<2x32xf32, #tpu.memory_space<vmem>>, %arg6: memref<64x2xf32, #tpu.memory_space<vmem>>) attributes {dimension_semantics = [#tpu.dimension_semantics<parallel>], iteration_bounds = array<i64: 1>, scalar_prefetch = 0 : i64, scratch_operands = 0 : i64, tpu.core_type = #tpu.core_type<tc>, window_params = [{transform_indices = @transform_0, window_bounds = array<i64: 64, 16>}, {pipeline_mode = #tpu.pipeline_mode<synchronous>, transform_indices = @transform_1, window_bounds = array<i64: 32, 16>}, {pipeline_mode = #tpu.pipeline_mode<synchronous>, transform_indices = @transform_2, window_bounds = array<i64: 32, 16>}, {pipeline_mode = #tpu.pipeline_mode<synchronous>, transform_indices = @transform_3, window_bounds = array<i64: 2, 32>}, {pipeline_mode = #tpu.pipeline_mode<synchronous>, transform_indices = @transform_4, window_bounds = array<i64: 2, 32>}, {transform_indices = @transform_5, window_bounds = array<i64: 64, 2>}]} {
    %c0 = arith.constant 0 : index
    %c0_0 = arith.constant 0 : index
    %0 = vector.load %arg1[%c0, %c0_0] : memref<64x16xf32, #tpu.memory_space<vmem>>, vector<64x16xf32>
    %c0_1 = arith.constant 0 : index
    %c0_2 = arith.constant 0 : index
    %1 = vector.load %arg2[%c0_1, %c0_2] : memref<32x16xf32, #tpu.memory_space<vmem>>, vector<32x16xf32>
    %cst = arith.constant dense<0.000000e+00> : vector<64x32xf32>
    %2 = tpu.matmul %0, %1, %cst {dimension_numbers = #tpu.dot_dimension_numbers<[1], [1], [0], [0], [0, 0, 1, 0], [], []>} : vector<64x16xf32>, vector<32x16xf32>, vector<64x32xf32> -> vector<64x32xf32>
    %c0_3 = arith.constant 0 : index
    %c0_4 = arith.constant 0 : index
    %3 = vector.load %arg3[%c0_3, %c0_4] : memref<32x16xf32, #tpu.memory_space<vmem>>, vector<32x16xf32>
    %cst_5 = arith.constant dense<0.000000e+00> : vector<64x32xf32>
    %4 = tpu.matmul %0, %3, %cst_5 {dimension_numbers = #tpu.dot_dimension_numbers<[1], [1], [0], [0], [0, 0, 1, 0], [], []>} : vector<64x16xf32>, vector<32x16xf32>, vector<64x32xf32> -> vector<64x32xf32>
    %cst_6 = arith.constant 0.000000e+00 : f32
    %5 = vector.broadcast %cst_6 : f32 to vector<64x32xf32>
    %6 = arith.cmpf ogt, %2, %5 : vector<64x32xf32>
    %cst_7 = arith.constant 0.000000e+00 : f32
    %7 = vector.broadcast %cst_7 : f32 to vector<64x32xf32>
    %8 = arith.select %6, %2, %7 : vector<64x32xi1>, vector<64x32xf32>
    %cst_8 = arith.constant 0.000000e+00 : f32
    %9 = vector.broadcast %cst_8 : f32 to vector<64x32xf32>
    %10 = arith.select %6, %4, %9 : vector<64x32xi1>, vector<64x32xf32>
    %c0_9 = arith.constant 0 : index
    %c0_10 = arith.constant 0 : index
    %11 = vector.load %arg4[%c0_9, %c0_10] : memref<2x32xf32, #tpu.memory_space<vmem>>, vector<2x32xf32>
    %cst_11 = arith.constant dense<0.000000e+00> : vector<64x2xf32>
    %12 = tpu.matmul %8, %11, %cst_11 {dimension_numbers = #tpu.dot_dimension_numbers<[1], [1], [0], [0], [0, 0, 1, 0], [], []>} : vector<64x32xf32>, vector<2x32xf32>, vector<64x2xf32> -> vector<64x2xf32>
    %c0_12 = arith.constant 0 : index
    %c0_13 = arith.constant 0 : index
    %13 = vector.load %arg5[%c0_12, %c0_13] : memref<2x32xf32, #tpu.memory_space<vmem>>, vector<2x32xf32>
    %cst_14 = arith.constant dense<0.000000e+00> : vector<64x2xf32>
    %14 = tpu.matmul %10, %13, %cst_14 {dimension_numbers = #tpu.dot_dimension_numbers<[1], [1], [0], [0], [0, 0, 1, 0], [], []>} : vector<64x32xf32>, vector<2x32xf32>, vector<64x2xf32> -> vector<64x2xf32>
    %15 = arith.addf %12, %14 : vector<64x2xf32>
    %c0_15 = arith.constant 0 : index
    %c0_16 = arith.constant 0 : index
    %16 = vector.load %arg6[%c0_15, %c0_16] : memref<64x2xf32, #tpu.memory_space<vmem>>, vector<64x2xf32>
    tpu.vector_store %arg6[%c0_15, %c0_16], %15 {strides = array<i32>} : memref<64x2xf32, #tpu.memory_space<vmem>>, vector<64x2xf32>,
    return
  }
  func.func @transform_0(%arg0: i32) -> (i32, i32) {
    %c0_i32 = arith.constant 0 : i32
    %c0_i32_0 = arith.constant 0 : i32
    return %arg0, %c0_i32 : i32, i32
  }
  func.func @transform_1(%arg0: i32) -> (i32, i32) {
    %c0_i32 = arith.constant 0 : i32
    %c0_i32_0 = arith.constant 0 : i32
    %c0_i32_1 = arith.constant 0 : i32
    return %c0_i32, %c0_i32_0 : i32, i32
  }
  func.func @transform_2(%arg0: i32) -> (i32, i32) {
    %c0_i32 = arith.constant 0 : i32
    %c0_i32_0 = arith.constant 0 : i32
    %c0_i32_1 = arith.constant 0 : i32
    return %c0_i32, %c0_i32_0 : i32, i32
  }
  func.func @transform_3(%arg0: i32) -> (i32, i32) {
    %c0_i32 = arith.constant 0 : i32
    %c0_i32_0 = arith.constant 0 : i32
    %c0_i32_1 = arith.constant 0 : i32
    return %c0_i32, %c0_i32_0 : i32, i32
  }
  func.func @transform_4(%arg0: i32) -> (i32, i32) {
    %c0_i32 = arith.constant 0 : i32
    %c0_i32_0 = arith.constant 0 : i32
    %c0_i32_1 = arith.constant 0 : i32
    return %c0_i32, %c0_i32_0 : i32, i32
  }
  func.func @transform_5(%arg0: i32) -> (i32, i32) {
    %c0_i32 = arith.constant 0 : i32
    %c0_i32_0 = arith.constant 0 : i32
    return %arg0, %c0_i32 : i32, i32
  }
}

</mosaic_0001>

<llo_original>
// kernel: tpu_custom_call.1
$region0: #{tpu_custom_call.1}
  #allocation0 [shape = 'u32[]', space=smem, size = 0x4, offset = 0x4, fixed_abs, tag = 'smem constant byte address 0x4 - core index']
  #allocation1 [shape = 'u32[144,128]{1,0:T(1,128)}', space=vmem, size = 0x12000, scoped, tag = 'internal scratch']
  %s0 = inlined_call_operand.vmem [shape: f32[64,16], index: 0, kind: input, shape index: {}]
  %s1 = inlined_call_operand.vmem [shape: f32[32,16], index: 1, kind: input, shape index: {}]
  %s2 = inlined_call_operand.vmem [shape: f32[32,16], index: 2, kind: input, shape index: {}]
  %s3 = inlined_call_operand.vmem [shape: f32[2,32], index: 3, kind: input, shape index: {}]
  %s4 = inlined_call_operand.vmem [shape: f32[2,32], index: 4, kind: input, shape index: {}]
  %s5 = inlined_call_operand.vmem [shape: f32[64,2], index: 5, kind: output, shape index: {}]
  %s6 = sld [smem:[#allocation0]]
  $region30: #{tpu_custom_call.1} parent=0
    _
  %s8 = ssub.s32 1, %s6
  %s9 = scalar_select 0, %s8, %s6
  // Predicated region
  $region2: #{tpu_custom_call.1} parent=0 // pred_check
    _
  $region3: #{tpu_custom_call.1} parent=0 // pred_check_branch
    %11 = sbr.rel (0) target = $region5
  $region4: #{tpu_custom_call.1} parent=0 // pred_region
    _
  $region5: #{tpu_custom_call.1} parent=0 // pred_fallthru
    _
  // Predicated region
  $region6: #{tpu_custom_call.1} parent=0 // pred_check
    _
  $region7: #{tpu_custom_call.1} parent=0 // pred_check_branch
    %13 = sbr.rel (0) target = $region9
  $region8: #{tpu_custom_call.1} parent=0 // pred_region
    _
  $region9: #{tpu_custom_call.1} parent=0 // pred_fallthru
    _
  // Predicated region
  $region10: #{tpu_custom_call.1} parent=0 // pred_check
    _
  $region11: #{tpu_custom_call.1} parent=0 // pred_check_branch
    %15 = sbr.rel (0) target = $region13
  $region12: #{tpu_custom_call.1} parent=0 // pred_region
    _
  $region13: #{tpu_custom_call.1} parent=0 // pred_fallthru
    _
  // Predicated region
  $region14: #{tpu_custom_call.1} parent=0 // pred_check
    _
  $region15: #{tpu_custom_call.1} parent=0 // pred_check_branch
    %17 = sbr.rel (0) target = $region17
  $region16: #{tpu_custom_call.1} parent=0 // pred_region
    _
  $region17: #{tpu_custom_call.1} parent=0 // pred_fallthru
    _
  // Predicated region
  $region18: #{tpu_custom_call.1} parent=0 // pred_check
    _
  $region19: #{tpu_custom_call.1} parent=0 // pred_check_branch
    %19 = sbr.rel (0) target = $region21
  $region20: #{tpu_custom_call.1} parent=0 // pred_region
    _
  $region21: #{tpu_custom_call.1} parent=0 // pred_fallthru
    _
  %v20 = vld [vmem:[%s0] sm:$0xff]
  %v21 = vld [vmem:[%s0 + $0x8] sm:$0xff]
  %v22 = vld [vmem:[%s0 + $0x10] sm:$0xff]
  %v23 = vld [vmem:[%s0 + $0x18] sm:$0xff]
  %v24 = vld [vmem:[%s0 + $0x20] sm:$0xff]
  %v25 = vld [vmem:[%s0 + $0x28] sm:$0xff]
  %v26 = vld [vmem:[%s0 + $0x30] sm:$0xff]
  %v27 = vld [vmem:[%s0 + $0x38] sm:$0xff]
  %v28 = vld [vmem:[%s1] sm:$0xff]
  %v29 = vld [vmem:[%s1 + $0x8] sm:$0xff]
  %v30 = vld [vmem:[%s1 + $0x10] sm:$0xff]
  %v31 = vld [vmem:[%s1 + $0x18] sm:$0xff]
  %vm32 = vcmask 130048
  %v34 = vsel %vm32, %v20, 0
  %v37 = vsel %vm32, %v21, 0
  %v40 = vsel %vm32, %v22, 0
  %v43 = vsel %vm32, %v23, 0
  %v46 = vsel %vm32, %v24, 0
  %v49 = vsel %vm32, %v25, 0
  %v52 = vsel %vm32, %v26, 0
  %v55 = vsel %vm32, %v27, 0
  %v58 = vsel %vm32, %v28, 0
  %v61 = vsel %vm32, %v29, 0
  %v64 = vsel %vm32, %v30, 0
  %v67 = vsel %vm32, %v31, 0
  %69 = vmatprep.subr.mxu0 0.0
  %70 = vmatpush1.xpose.msra.mxu0 %v58
  %71 = vmatprep.subr.mxu0 0.0
  %72 = vmatpush1.xpose.msra.mxu0 %v61
  %73 = vmatprep.subr.mxu0 0.0
  %74 = vmatpush1.xpose.msra.mxu0 %v64
  %75 = vmatprep.subr.mxu0 0.0
  %76 = vmatpush1.xpose.msra.mxu0 %v67
  %77 = vmatprep.subr.mxu0 0.0
  %78 = vmatpush1.xpose.msra.mxu0 0.0
  %79 = vmatprep.subr.mxu0 0.0
  %80 = vmatpush1.xpose.msra.mxu0 0.0
  %81 = vmatprep.subr.mxu0 0.0
  %82 = vmatpush1.xpose.msra.mxu0 0.0
  %83 = vmatprep.subr.mxu0 0.0
  %84 = vmatpush1.xpose.msra.mxu0 0.0
  %85 = vmatprep.subr.mxu0 0.0
  %86 = vmatpush1.xpose.msra.mxu0 0.0
  %87 = vmatprep.subr.mxu0 0.0
  %88 = vmatpush1.xpose.msra.mxu0 0.0
  %89 = vmatprep.subr.mxu0 0.0
  %90 = vmatpush1.xpose.msra.mxu0 0.0
  %91 = vmatprep.subr.mxu0 0.0
  %92 = vmatpush1.xpose.msra.mxu0 0.0
  %93 = vmatprep.subr.mxu0 0.0
  %94 = vmatpush1.xpose.msra.mxu0 0.0
  %95 = vmatprep.subr.mxu0 0.0
  %96 = vmatpush1.xpose.msra.mxu0 0.0
  %97 = vmatprep.subr.mxu0 0.0
  %98 = vmatpush1.xpose.msra.mxu0 0.0
  %99 = vmatprep.subr.mxu0 0.0
  %100 = vmatpush1.xpose.msra.mxu0 0.0
  %101 = vmatprep.subr.mxu0 0.0
  %102 = vmatpush1.xpose.msra.mxu0 0.0
  %103 = vmatprep.subr.mxu0 0.0
  %104 = vmatpush1.xpose.msra.mxu0 0.0
  %105 = vmatprep.subr.mxu0 0.0
  %106 = vmatpush1.xpose.msra.mxu0 0.0
  %107 = vmatprep.subr.mxu0 0.0
  %108 = vmatpush1.xpose.msra.mxu0 0.0
  %109 = vmatprep.subr.mxu0 0.0
  %110 = vmatpush1.xpose.msra.mxu0 0.0
  %111 = vmatprep.subr.mxu0 0.0
  %112 = vmatpush1.xpose.msra.mxu0 0.0
  %113 = vmatprep.subr.mxu0 0.0
  %114 = vmatpush1.xpose.msra.mxu0 0.0
  %115 = vmatprep.subr.mxu0 0.0
  %116 = vmatpush1.xpose.msra.mxu0 0.0
  %117 = vmatprep.subr.mxu0 0.0
  %118 = vmatpush1.xpose.msra.mxu0 0.0
  %119 = vmatprep.subr.mxu0 0.0
  %120 = vmatpush1.xpose.msra.mxu0 0.0
  %121 = vmatprep.subr.mxu0 0.0
  %122 = vmatpush1.xpose.msra.mxu0 0.0
  %123 = vmatprep.subr.mxu0 0.0
  %124 = vmatpush1.xpose.msra.mxu0 0.0
  %125 = vmatprep.subr.mxu0 0.0
  %126 = vmatpush1.xpose.msra.mxu0 0.0
  %127 = vmatprep.subr.mxu0 0.0
  %128 = vmatpush1.xpose.msra.mxu0 0.0
  %129 = vmatprep.subr.mxu0 0.0
  %130 = vmatpush1.xpose.msra.mxu0 0.0
  %131 = vmatprep.subr.mxu0 0.0
  %132 = vmatpush1.xpose.msra.mxu0 0.0
  %133 = vmatprep.mubr.f32.mxu0 0.0
  %134 = vmatmul.mubr.f32.gmra.mrb[0].mxu0 %v34
  %v135 = vpop.f32.mrb[0].mxu0
  %v136 = vadd.f32 0.0, %v135
  %v137 = vpop.f32.mrb[0].mxu0
  %138 = vmatprep.mubr.f32.mxu0 0.0
  %139 = vmatmul.mubr.f32.gmra.mrb[0].mxu0 %v37
  %v140 = vpop.f32.mrb[0].mxu0
  %v141 = vadd.f32 0.0, %v140
  %v142 = vpop.f32.mrb[0].mxu0
  %143 = vmatprep.mubr.f32.mxu0 0.0
  %144 = vmatmul.mubr.f32.gmra.mrb[0].mxu0 %v40
  %v145 = vpop.f32.mrb[0].mxu0
  %v146 = vadd.f32 0.0, %v145
  %v147 = vpop.f32.mrb[0].mxu0
  %148 = vmatprep.mubr.f32.mxu0 0.0
  %149 = vmatmul.mubr.f32.gmra.mrb[0].mxu0 %v43
  %v150 = vpop.f32.mrb[0].mxu0
  %v151 = vadd.f32 0.0, %v150
  %v152 = vpop.f32.mrb[0].mxu0
  %153 = vmatprep.mubr.f32.mxu0 0.0
  %154 = vmatmul.mubr.f32.gmra.mrb[0].mxu0 %v46
  %v155 = vpop.f32.mrb[0].mxu0
  %v156 = vadd.f32 0.0, %v155
  %v157 = vpop.f32.mrb[0].mxu0
  %158 = vmatprep.mubr.f32.mxu0 0.0
  %159 = vmatmul.mubr.f32.gmra.mrb[0].mxu0 %v49
  %v160 = vpop.f32.mrb[0].mxu0
  %v161 = vadd.f32 0.0, %v160
  %v162 = vpop.f32.mrb[0].mxu0
  %163 = vmatprep.mubr.f32.mxu0 0.0
  %164 = vmatmul.mubr.f32.gmra.mrb[0].mxu0 %v52
  %v165 = vpop.f32.mrb[0].mxu0
  %v166 = vadd.f32 0.0, %v165
  %v167 = vpop.f32.mrb[0].mxu0
  %168 = vmatprep.mubr.f32.mxu0 0.0
  %169 = vmatmul.mubr.f32.gmra.mrb[0].mxu0 %v55
  %v170 = vpop.f32.mrb[0].mxu0
  %v171 = vadd.f32 0.0, %v170
  %v172 = vpop.f32.mrb[0].mxu0
  %173 = vdwg.mxu0
  %v174 = vld [vmem:[%s2] sm:$0xff]
  %v175 = vld [vmem:[%s2 + $0x8] sm:$0xff]
  %v176 = vld [vmem:[%s2 + $0x10] sm:$0xff]
  %v177 = vld [vmem:[%s2 + $0x18] sm:$0xff]
  %v179 = vsel %vm32, %v174, 0
  %v182 = vsel %vm32, %v175, 0
  %v185 = vsel %vm32, %v176, 0
  %v188 = vsel %vm32, %v177, 0
  %190 = vmatprep.subr.mxu0 0.0
  %191 = vmatpush1.xpose.msra.mxu0 %v179
  %192 = vmatprep.subr.mxu0 0.0
  %193 = vmatpush1.xpose.msra.mxu0 %v182
  %194 = vmatprep.subr.mxu0 0.0
  %195 = vmatpush1.xpose.msra.mxu0 %v185
  %196 = vmatprep.subr.mxu0 0.0
  %197 = vmatpush1.xpose.msra.mxu0 %v188
  %198 = vmatprep.subr.mxu0 0.0
  %199 = vmatpush1.xpose.msra.mxu0 0.0
  %200 = vmatprep.subr.mxu0 0.0
  %201 = vmatpush1.xpose.msra.mxu0 0.0
  %202 = vmatprep.subr.mxu0 0.0
  %203 = vmatpush1.xpose.msra.mxu0 0.0
  %204 = vmatprep.subr.mxu0 0.0
  %205 = vmatpush1.xpose.msra.mxu0 0.0
  %206 = vmatprep.subr.mxu0 0.0
  %207 = vmatpush1.xpose.msra.mxu0 0.0
  %208 = vmatprep.subr.mxu0 0.0
  %209 = vmatpush1.xpose.msra.mxu0 0.0
  %210 = vmatprep.subr.mxu0 0.0
  %211 = vmatpush1.xpose.msra.mxu0 0.0
  %212 = vmatprep.subr.mxu0 0.0
  %213 = vmatpush1.xpose.msra.mxu0 0.0
  %214 = vmatprep.subr.mxu0 0.0
  %215 = vmatpush1.xpose.msra.mxu0 0.0
  %216 = vmatprep.subr.mxu0 0.0
  %217 = vmatpush1.xpose.msra.mxu0 0.0
  %218 = vmatprep.subr.mxu0 0.0
  %219 = vmatpush1.xpose.msra.mxu0 0.0
  %220 = vmatprep.subr.mxu0 0.0
  %221 = vmatpush1.xpose.msra.mxu0 0.0
  %222 = vmatprep.subr.mxu0 0.0
  %223 = vmatpush1.xpose.msra.mxu0 0.0
  %224 = vmatprep.subr.mxu0 0.0
  %225 = vmatpush1.xpose.msra.mxu0 0.0
  %226 = vmatprep.subr.mxu0 0.0
  %227 = vmatpush1.xpose.msra.mxu0 0.0
  %228 = vmatprep.subr.mxu0 0.0
  %229 = vmatpush1.xpose.msra.mxu0 0.0
  %230 = vmatprep.subr.mxu0 0.0
  %231 = vmatpush1.xpose.msra.mxu0 0.0
  %232 = vmatprep.subr.mxu0 0.0
  %233 = vmatpush1.xpose.msra.mxu0 0.0
  %234 = vmatprep.subr.mxu0 0.0
  %235 = vmatpush1.xpose.msra.mxu0 0.0
  %236 = vmatprep.subr.mxu0 0.0
  %237 = vmatpush1.xpose.msra.mxu0 0.0
  %238 = vmatprep.subr.mxu0 0.0
  %239 = vmatpush1.xpose.msra.mxu0 0.0
  %240 = vmatprep.subr.mxu0 0.0
  %241 = vmatpush1.xpose.msra.mxu0 0.0
  %242 = vmatprep.subr.mxu0 0.0
  %243 = vmatpush1.xpose.msra.mxu0 0.0
  %244 = vmatprep.subr.mxu0 0.0
  %245 = vmatpush1.xpose.msra.mxu0 0.0
  %246 = vmatprep.subr.mxu0 0.0
  %247 = vmatpush1.xpose.msra.mxu0 0.0
  %248 = vmatprep.subr.mxu0 0.0
  %249 = vmatpush1.xpose.msra.mxu0 0.0
  %250 = vmatprep.subr.mxu0 0.0
  %251 = vmatpush1.xpose.msra.mxu0 0.0
  %252 = vmatprep.subr.mxu0 0.0
  %253 = vmatpush1.xpose.msra.mxu0 0.0
  %254 = vmatprep.mubr.f32.mxu0 0.0
  %255 = vmatmul.mubr.f32.gmra.mrb[0].mxu0 %v34
  %v256 = vpop.f32.mrb[0].mxu0
  %v257 = vadd.f32 0.0, %v256
  %v258 = vpop.f32.mrb[0].mxu0
  %259 = vmatprep.mubr.f32.mxu0 0.0
  %260 = vmatmul.mubr.f32.gmra.mrb[0].mxu0 %v37
  %v261 = vpop.f32.mrb[0].mxu0
  %v262 = vadd.f32 0.0, %v261
  %v263 = vpop.f32.mrb[0].mxu0
  %264 = vmatprep.mubr.f32.mxu0 0.0
  %265 = vmatmul.mubr.f32.gmra.mrb[0].mxu0 %v40
  %v266 = vpop.f32.mrb[0].mxu0
  %v267 = vadd.f32 0.0, %v266
  %v268 = vpop.f32.mrb[0].mxu0
  %269 = vmatprep.mubr.f32.mxu0 0.0
  %270 = vmatmul.mubr.f32.gmra.mrb[0].mxu0 %v43
  %v271 = vpop.f32.mrb[0].mxu0
  %v272 = vadd.f32 0.0, %v271
  %v273 = vpop.f32.mrb[0].mxu0
  %274 = vmatprep.mubr.f32.mxu0 0.0
  %275 = vmatmul.mubr.f32.gmra.mrb[0].mxu0 %v46
  %v276 = vpop.f32.mrb[0].mxu0
  %v277 = vadd.f32 0.0, %v276
  %v278 = vpop.f32.mrb[0].mxu0
  %279 = vmatprep.mubr.f32.mxu0 0.0
  %280 = vmatmul.mubr.f32.gmra.mrb[0].mxu0 %v49
  %v281 = vpop.f32.mrb[0].mxu0
  %v282 = vadd.f32 0.0, %v281
  %v283 = vpop.f32.mrb[0].mxu0
  %284 = vmatprep.mubr.f32.mxu0 0.0
  %285 = vmatmul.mubr.f32.gmra.mrb[0].mxu0 %v52
  %v286 = vpop.f32.mrb[0].mxu0
  %v287 = vadd.f32 0.0, %v286
  %v288 = vpop.f32.mrb[0].mxu0
  %289 = vmatprep.mubr.f32.mxu0 0.0
  %290 = vmatmul.mubr.f32.gmra.mrb[0].mxu0 %v55
  %v291 = vpop.f32.mrb[0].mxu0
  %v292 = vadd.f32 0.0, %v291
  %v293 = vpop.f32.mrb[0].mxu0
  %294 = vdwg.mxu0
  %vm295 = vcmp.gt.f32.partialorder %v136, 0.0
  %vm296 = vcmp.gt.f32.partialorder %v141, 0.0
  %vm297 = vcmp.gt.f32.partialorder %v146, 0.0
  %vm298 = vcmp.gt.f32.partialorder %v151, 0.0
  %vm299 = vcmp.gt.f32.partialorder %v156, 0.0
  %vm300 = vcmp.gt.f32.partialorder %v161, 0.0
  %vm301 = vcmp.gt.f32.partialorder %v166, 0.0
  %vm302 = vcmp.gt.f32.partialorder %v171, 0.0
  %v303 = vsel %vm295, %v136, 0.0
  %v304 = vsel %vm296, %v141, 0.0
  %v305 = vsel %vm297, %v146, 0.0
  %v306 = vsel %vm298, %v151, 0.0
  %v307 = vsel %vm299, %v156, 0.0
  %v308 = vsel %vm300, %v161, 0.0
  %v309 = vsel %vm301, %v166, 0.0
  %v310 = vsel %vm302, %v171, 0.0
  %v311 = vsel %vm295, %v257, 0.0
  %v312 = vsel %vm296, %v262, 0.0
  %v313 = vsel %vm297, %v267, 0.0
  %v314 = vsel %vm298, %v272, 0.0
  %v315 = vsel %vm299, %v277, 0.0
  %v316 = vsel %vm300, %v282, 0.0
  %v317 = vsel %vm301, %v287, 0.0
  %v318 = vsel %vm302, %v292, 0.0
  %v319 = vld [vmem:[%s3] sm:$0x3]
  %v320 = vld [vmem:[%s4] sm:$0x3]
  %vm321 = vcmask 261120
  %v323 = vsel %vm321, %v311, 0
  %v326 = vsel %vm321, %v312, 0
  %v329 = vsel %vm321, %v313, 0
  %v332 = vsel %vm321, %v314, 0
  %v335 = vsel %vm321, %v315, 0
  %v338 = vsel %vm321, %v316, 0
  %v341 = vsel %vm321, %v317, 0
  %v344 = vsel %vm321, %v318, 0
  %v347 = vsel %vm321, %v320, 0
  %349 = vmatprep.subr.mxu0 0.0
  %350 = vmatpush1.xpose.msra.mxu0 %v347
  %351 = vmatprep.subr.mxu0 0.0
  %352 = vmatpush1.xpose.msra.mxu0 0.0
  %353 = vmatprep.subr.mxu0 0.0
  %354 = vmatpush1.xpose.msra.mxu0 0.0
  %355 = vmatprep.subr.mxu0 0.0
  %356 = vmatpush1.xpose.msra.mxu0 0.0
  %357 = vmatprep.subr.mxu0 0.0
  %358 = vmatpush1.xpose.msra.mxu0 0.0
  %359 = vmatprep.subr.mxu0 0.0
  %360 = vmatpush1.xpose.msra.mxu0 0.0
  %361 = vmatprep.subr.mxu0 0.0
  %362 = vmatpush1.xpose.msra.mxu0 0.0
  %363 = vmatprep.subr.mxu0 0.0
  %364 = vmatpush1.xpose.msra.mxu0 0.0
  %365 = vmatprep.subr.mxu0 0.0
  %366 = vmatpush1.xpose.msra.mxu0 0.0
  %367 = vmatprep.subr.mxu0 0.0
  %368 = vmatpush1.xpose.msra.mxu0 0.0
  %369 = vmatprep.subr.mxu0 0.0
  %370 = vmatpush1.xpose.msra.mxu0 0.0
  %371 = vmatprep.subr.mxu0 0.0
  %372 = vmatpush1.xpose.msra.mxu0 0.0
  %373 = vmatprep.subr.mxu0 0.0
  %374 = vmatpush1.xpose.msra.mxu0 0.0
  %375 = vmatprep.subr.mxu0 0.0
  %376 = vmatpush1.xpose.msra.mxu0 0.0
  %377 = vmatprep.subr.mxu0 0.0
  %378 = vmatpush1.xpose.msra.mxu0 0.0
  %379 = vmatprep.subr.mxu0 0.0
  %380 = vmatpush1.xpose.msra.mxu0 0.0
  %381 = vmatprep.subr.mxu0 0.0
  %382 = vmatpush1.xpose.msra.mxu0 0.0
  %383 = vmatprep.subr.mxu0 0.0
  %384 = vmatpush1.xpose.msra.mxu0 0.0
  %385 = vmatprep.subr.mxu0 0.0
  %386 = vmatpush1.xpose.msra.mxu0 0.0
  %387 = vmatprep.subr.mxu0 0.0
  %388 = vmatpush1.xpose.msra.mxu0 0.0
  %389 = vmatprep.subr.mxu0 0.0
  %390 = vmatpush1.xpose.msra.mxu0 0.0
  %391 = vmatprep.subr.mxu0 0.0
  %392 = vmatpush1.xpose.msra.mxu0 0.0
  %393 = vmatprep.subr.mxu0 0.0
  %394 = vmatpush1.xpose.msra.mxu0 0.0
  %395 = vmatprep.subr.mxu0 0.0
  %396 = vmatpush1.xpose.msra.mxu0 0.0
  %397 = vmatprep.subr.mxu0 0.0
  %398 = vmatpush1.xpose.msra.mxu0 0.0
  %399 = vmatprep.subr.mxu0 0.0
  %400 = vmatpush1.xpose.msra.mxu0 0.0
  %401 = vmatprep.subr.mxu0 0.0
  %402 = vmatpush1.xpose.msra.mxu0 0.0
  %403 = vmatprep.subr.mxu0 0.0
  %404 = vmatpush1.xpose.msra.mxu0 0.0
  %405 = vmatprep.subr.mxu0 0.0
  %406 = vmatpush1.xpose.msra.mxu0 0.0
  %407 = vmatprep.subr.mxu0 0.0
  %408 = vmatpush1.xpose.msra.mxu0 0.0
  %409 = vmatprep.subr.mxu0 0.0
  %410 = vmatpush1.xpose.msra.mxu0 0.0
  %411 = vmatprep.subr.mxu0 0.0
  %412 = vmatpush1.xpose.msra.mxu0 0.0
  %413 = vmatprep.mubr.f32.mxu0 0.0
  %414 = vmatmul.mubr.f32.gmra.mrb[0].mxu0 %v323
  %v415 = vpop.f32.mrb[0].mxu0
  %v416 = vadd.f32 0.0, %v415
  %v417 = vpop.f32.mrb[0].mxu0
  %418 = vmatprep.mubr.f32.mxu0 0.0
  %419 = vmatmul.mubr.f32.gmra.mrb[0].mxu0 %v326
  %v420 = vpop.f32.mrb[0].mxu0
  %v421 = vadd.f32 0.0, %v420
  %v422 = vpop.f32.mrb[0].mxu0
  %423 = vmatprep.mubr.f32.mxu0 0.0
  %424 = vmatmul.mubr.f32.gmra.mrb[0].mxu0 %v329
  %v425 = vpop.f32.mrb[0].mxu0
  %v426 = vadd.f32 0.0, %v425
  %v427 = vpop.f32.mrb[0].mxu0
  %428 = vmatprep.mubr.f32.mxu0 0.0
  %429 = vmatmul.mubr.f32.gmra.mrb[0].mxu0 %v332
  %v430 = vpop.f32.mrb[0].mxu0
  %v431 = vadd.f32 0.0, %v430
  %v432 = vpop.f32.mrb[0].mxu0
  %433 = vmatprep.mubr.f32.mxu0 0.0
  %434 = vmatmul.mubr.f32.gmra.mrb[0].mxu0 %v335
  %v435 = vpop.f32.mrb[0].mxu0
  %v436 = vadd.f32 0.0, %v435
  %v437 = vpop.f32.mrb[0].mxu0
  %438 = vmatprep.mubr.f32.mxu0 0.0
  %439 = vmatmul.mubr.f32.gmra.mrb[0].mxu0 %v338
  %v440 = vpop.f32.mrb[0].mxu0
  %v441 = vadd.f32 0.0, %v440
  %v442 = vpop.f32.mrb[0].mxu0
  %443 = vmatprep.mubr.f32.mxu0 0.0
  %444 = vmatmul.mubr.f32.gmra.mrb[0].mxu0 %v341
  %v445 = vpop.f32.mrb[0].mxu0
  %v446 = vadd.f32 0.0, %v445
  %v447 = vpop.f32.mrb[0].mxu0
  %448 = vmatprep.mubr.f32.mxu0 0.0
  %449 = vmatmul.mubr.f32.gmra.mrb[0].mxu0 %v344
  %v450 = vpop.f32.mrb[0].mxu0
  %v451 = vadd.f32 0.0, %v450
  %v452 = vpop.f32.mrb[0].mxu0
  %453 = vdwg.mxu0
  %v455 = vsel %vm321, %v303, 0
  %v458 = vsel %vm321, %v304, 0
  %v461 = vsel %vm321, %v305, 0
  %v464 = vsel %vm321, %v306, 0
  %v467 = vsel %vm321, %v307, 0
  %v470 = vsel %vm321, %v308, 0
  %v473 = vsel %vm321, %v309, 0
  %v476 = vsel %vm321, %v310, 0
  %v479 = vsel %vm321, %v319, 0
  %481 = vmatprep.subr.mxu0 0.0
  %482 = vmatpush1.xpose.msra.mxu0 %v479
  %483 = vmatprep.subr.mxu0 0.0
  %484 = vmatpush1.xpose.msra.mxu0 0.0
  %485 = vmatprep.subr.mxu0 0.0
  %486 = vmatpush1.xpose.msra.mxu0 0.0
  %487 = vmatprep.subr.mxu0 0.0
  %488 = vmatpush1.xpose.msra.mxu0 0.0
  %489 = vmatprep.subr.mxu0 0.0
  %490 = vmatpush1.xpose.msra.mxu0 0.0
  %491 = vmatprep.subr.mxu0 0.0
  %492 = vmatpush1.xpose.msra.mxu0 0.0
  %493 = vmatprep.subr.mxu0 0.0
  %494 = vmatpush1.xpose.msra.mxu0 0.0
  %495 = vmatprep.subr.mxu0 0.0
  %496 = vmatpush1.xpose.msra.mxu0 0.0
  %497 = vmatprep.subr.mxu0 0.0
  %498 = vmatpush1.xpose.msra.mxu0 0.0
  %499 = vmatprep.subr.mxu0 0.0
  %500 = vmatpush1.xpose.msra.mxu0 0.0
  %501 = vmatprep.subr.mxu0 0.0
  %502 = vmatpush1.xpose.msra.mxu0 0.0
  %503 = vmatprep.subr.mxu0 0.0
  %504 = vmatpush1.xpose.msra.mxu0 0.0
  %505 = vmatprep.subr.mxu0 0.0
  %506 = vmatpush1.xpose.msra.mxu0 0.0
  %507 = vmatprep.subr.mxu0 0.0
  %508 = vmatpush1.xpose.msra.mxu0 0.0
  %509 = vmatprep.subr.mxu0 0.0
  %510 = vmatpush1.xpose.msra.mxu0 0.0
  %511 = vmatprep.subr.mxu0 0.0
  %512 = vmatpush1.xpose.msra.mxu0 0.0
  %513 = vmatprep.subr.mxu0 0.0
  %514 = vmatpush1.xpose.msra.mxu0 0.0
  %515 = vmatprep.subr.mxu0 0.0
  %516 = vmatpush1.xpose.msra.mxu0 0.0
  %517 = vmatprep.subr.mxu0 0.0
  %518 = vmatpush1.xpose.msra.mxu0 0.0
  %519 = vmatprep.subr.mxu0 0.0
  %520 = vmatpush1.xpose.msra.mxu0 0.0
  %521 = vmatprep.subr.mxu0 0.0
  %522 = vmatpush1.xpose.msra.mxu0 0.0
  %523 = vmatprep.subr.mxu0 0.0
  %524 = vmatpush1.xpose.msra.mxu0 0.0
  %525 = vmatprep.subr.mxu0 0.0
  %526 = vmatpush1.xpose.msra.mxu0 0.0
  %527 = vmatprep.subr.mxu0 0.0
  %528 = vmatpush1.xpose.msra.mxu0 0.0
  %529 = vmatprep.subr.mxu0 0.0
  %530 = vmatpush1.xpose.msra.mxu0 0.0
  %531 = vmatprep.subr.mxu0 0.0
  %532 = vmatpush1.xpose.msra.mxu0 0.0
  %533 = vmatprep.subr.mxu0 0.0
  %534 = vmatpush1.xpose.msra.mxu0 0.0
  %535 = vmatprep.subr.mxu0 0.0
  %536 = vmatpush1.xpose.msra.mxu0 0.0
  %537 = vmatprep.subr.mxu0 0.0
  %538 = vmatpush1.xpose.msra.mxu0 0.0
  %539 = vmatprep.subr.mxu0 0.0
  %540 = vmatpush1.xpose.msra.mxu0 0.0
  %541 = vmatprep.subr.mxu0 0.0
  %542 = vmatpush1.xpose.msra.mxu0 0.0
  %543 = vmatprep.subr.mxu0 0.0
  %544 = vmatpush1.xpose.msra.mxu0 0.0
  %545 = vmatprep.mubr.f32.mxu0 0.0
  %546 = vmatmul.mubr.f32.gmra.mrb[0].mxu0 %v455
  %v547 = vpop.f32.mrb[0].mxu0
  %v548 = vadd.f32 %v416, %v547
  %v549 = vpop.f32.mrb[0].mxu0
  %550 = vmatprep.mubr.f32.mxu0 0.0
  %551 = vmatmul.mubr.f32.gmra.mrb[0].mxu0 %v458
  %v552 = vpop.f32.mrb[0].mxu0
  %v553 = vadd.f32 %v421, %v552
  %v554 = vpop.f32.mrb[0].mxu0
  %555 = vmatprep.mubr.f32.mxu0 0.0
  %556 = vmatmul.mubr.f32.gmra.mrb[0].mxu0 %v461
  %v557 = vpop.f32.mrb[0].mxu0
  %v558 = vadd.f32 %v426, %v557
  %v559 = vpop.f32.mrb[0].mxu0
  %560 = vmatprep.mubr.f32.mxu0 0.0
  %561 = vmatmul.mubr.f32.gmra.mrb[0].mxu0 %v464
  %v562 = vpop.f32.mrb[0].mxu0
  %v563 = vadd.f32 %v431, %v562
  %v564 = vpop.f32.mrb[0].mxu0
  %565 = vmatprep.mubr.f32.mxu0 0.0
  %566 = vmatmul.mubr.f32.gmra.mrb[0].mxu0 %v467
  %v567 = vpop.f32.mrb[0].mxu0
  %v568 = vadd.f32 %v436, %v567
  %v569 = vpop.f32.mrb[0].mxu0
  %570 = vmatprep.mubr.f32.mxu0 0.0
  %571 = vmatmul.mubr.f32.gmra.mrb[0].mxu0 %v470
  %v572 = vpop.f32.mrb[0].mxu0
  %v573 = vadd.f32 %v441, %v572
  %v574 = vpop.f32.mrb[0].mxu0
  %575 = vmatprep.mubr.f32.mxu0 0.0
  %576 = vmatmul.mubr.f32.gmra.mrb[0].mxu0 %v473
  %v577 = vpop.f32.mrb[0].mxu0
  %v578 = vadd.f32 %v446, %v577
  %v579 = vpop.f32.mrb[0].mxu0
  %580 = vmatprep.mubr.f32.mxu0 0.0
  %581 = vmatmul.mubr.f32.gmra.mrb[0].mxu0 %v476
  %v582 = vpop.f32.mrb[0].mxu0
  %v583 = vadd.f32 %v451, %v582
  %v584 = vpop.f32.mrb[0].mxu0
  %585 = vdwg.mxu0
  %vm586 = vcmask 15360
  %587 = vst.msk [vmem:[%s5] sm:$0xff] %vm586, %v548
  %588 = vst.msk [vmem:[%s5 + $0x8] sm:$0xff] %vm586, %v553
  %589 = vst.msk [vmem:[%s5 + $0x10] sm:$0xff] %vm586, %v558
  %590 = vst.msk [vmem:[%s5 + $0x18] sm:$0xff] %vm586, %v563
  %591 = vst.msk [vmem:[%s5 + $0x20] sm:$0xff] %vm586, %v568
  %592 = vst.msk [vmem:[%s5 + $0x28] sm:$0xff] %vm586, %v573
  %593 = vst.msk [vmem:[%s5 + $0x30] sm:$0xff] %vm586, %v578
  %594 = vst.msk [vmem:[%s5 + $0x38] sm:$0xff] %vm586, %v583
  // Predicated region
  $region22: #{tpu_custom_call.1} parent=0 // pred_check
    _
  $region23: #{tpu_custom_call.1} parent=0 // pred_check_branch
    %596 = sbr.rel (0) target = $region25
  $region24: #{tpu_custom_call.1} parent=0 // pred_region
    _
  $region25: #{tpu_custom_call.1} parent=0 // pred_fallthru
    _
  // Predicated region
  $region26: #{tpu_custom_call.1} parent=0 // pred_check
    _
  $region27: #{tpu_custom_call.1} parent=0 // pred_check_branch
    %598 = sbr.rel (0) target = $region29
  $region28: #{tpu_custom_call.1} parent=0 // pred_region
    _
  $region29: #{tpu_custom_call.1} parent=0 // pred_fallthru
    _

// kernel: tpu_custom_call.1
$region0: #{tpu_custom_call.1}
  #allocation0 [shape = 'u32[]', space=smem, size = 0x4, offset = 0x4, fixed_abs, tag = 'smem constant byte address 0x4 - core index']
  #allocation1 [shape = 'u32[144,128]{1,0:T(1,128)}', space=vmem, size = 0x12000, scoped, tag = 'internal scratch']
  %s0 = inlined_call_operand.vmem [shape: f32[64,16], index: 0, kind: input, shape index: {}]
  %s1 = inlined_call_operand.vmem [shape: f32[32,16], index: 1, kind: input, shape index: {}]
  %s2 = inlined_call_operand.vmem [shape: f32[32,16], index: 2, kind: input, shape index: {}]
  %s3 = inlined_call_operand.vmem [shape: f32[2,32], index: 3, kind: input, shape index: {}]
  %s4 = inlined_call_operand.vmem [shape: f32[2,32], index: 4, kind: input, shape index: {}]
  %s5 = inlined_call_operand.vmem [shape: f32[64,2], index: 5, kind: output, shape index: {}]
  %s6 = sld [smem:[#allocation0]]
  $region30: #{tpu_custom_call.1} parent=0
    _
  %s8 = ssub.s32 1, %s6
  %s9 = scalar_select 0, %s8, %s6
  // Predicated region
  $region2: #{tpu_custom_call.1} parent=0 // pred_check
    _
  $region3: #{tpu_custom_call.1} parent=0 // pred_check_branch
    %11 = sbr.rel (0) target = $region5
  $region4: #{tpu_custom_call.1} parent=0 // pred_region
    _
  $region5: #{tpu_custom_call.1} parent=0 // pred_fallthru
    _
  // Predicated region
  $region6: #{tpu_custom_call.1} parent=0 // pred_check
    _
  $region7: #{tpu_custom_call.1} parent=0 // pred_check_branch
    %13 = sbr.rel (0) target = $region9
  $region8: #{tpu_custom_call.1} parent=0 // pred_region
    _
  $region9: #{tpu_custom_call.1} parent=0 // pred_fallthru
    _
  // Predicated region
  $region10: #{tpu_custom_call.1} parent=0 // pred_check
    _
  $region11: #{tpu_custom_call.1} parent=0 // pred_check_branch
    %15 = sbr.rel (0) target = $region13
  $region12: #{tpu_custom_call.1} parent=0 // pred_region
    _
  $region13: #{tpu_custom_call.1} parent=0 // pred_fallthru
    _
  // Predicated region
  $region14: #{tpu_custom_call.1} parent=0 // pred_check
    _
  $region15: #{tpu_custom_call.1} parent=0 // pred_check_branch
    %17 = sbr.rel (0) target = $region17
  $region16: #{tpu_custom_call.1} parent=0 // pred_region
    _
  $region17: #{tpu_custom_call.1} parent=0 // pred_fallthru
    _
  // Predicated region
  $region18: #{tpu_custom_call.1} parent=0 // pred_check
    _
  $region19: #{tpu_custom_call.1} parent=0 // pred_check_branch
    %19 = sbr.rel (0) target = $region21
  $region20: #{tpu_custom_call.1} parent=0 // pred_region
    _
  $region21: #{tpu_custom_call.1} parent=0 // pred_fallthru
    _
  %v20 = vld [vmem:[%s0] sm:$0xff]
  %v21 = vld [vmem:[%s0 + $0x8] sm:$0xff]
  %v22 = vld [vmem:[%s0 + $0x10] sm:$0xff]
  %v23 = vld [vmem:[%s0 + $0x18] sm:$0xff]
  %v24 = vld [vmem:[%s0 + $0x20] sm:$0xff]
  %v25 = vld [vmem:[%s0 + $0x28] sm:$0xff]
  %v26 = vld [vmem:[%s0 + $0x30] sm:$0xff]
  %v27 = vld [vmem:[%s0 + $0x38] sm:$0xff]
  %v28 = vld [vmem:[%s1] sm:$0xff]
  %v29 = vld [vmem:[%s1 + $0x8] sm:$0xff]
  %v30 = vld [vmem:[%s1 + $0x10] sm:$0xff]
  %v31 = vld [vmem:[%s1 + $0x18] sm:$0xff]
  %vm32 = vcmask 130048
  %v34 = vsel %vm32, %v20, 0
  %v37 = vsel %vm32, %v21, 0
  %v40 = vsel %vm32, %v22, 0
  %v43 = vsel %vm32, %v23, 0
  %v46 = vsel %vm32, %v24, 0
  %v49 = vsel %vm32, %v25, 0
  %v52 = vsel %vm32, %v26, 0
  %v55 = vsel %vm32, %v27, 0
  %v58 = vsel %vm32, %v28, 0
  %v61 = vsel %vm32, %v29, 0
  %v64 = vsel %vm32, %v30, 0
  %v67 = vsel %vm32, %v31, 0
  %69 = vmatprep.subr.mxu0 0.0
  %70 = vmatpush1.xpose.msra.mxu0 %v58
  %71 = vmatprep.subr.mxu0 0.0
  %72 = vmatpush1.xpose.msra.mxu0 %v61
  %73 = vmatprep.subr.mxu0 0.0
  %74 = vmatpush1.xpose.msra.mxu0 %v64
  %75 = vmatprep.subr.mxu0 0.0
  %76 = vmatpush1.xpose.msra.mxu0 %v67
  %77 = vmatprep.subr.mxu0 0.0
  %78 = vmatpush1.xpose.msra.mxu0 0.0
  %79 = vmatprep.subr.mxu0 0.0
  %80 = vmatpush1.xpose.msra.mxu0 0.0
  %81 = vmatprep.subr.mxu0 0.0
  %82 = vmatpush1.xpose.msra.mxu0 0.0
  %83 = vmatprep.subr.mxu0 0.0
  %84 = vmatpush1.xpose.msra.mxu0 0.0
  %85 = vmatprep.subr.mxu0 0.0
  %86 = vmatpush1.xpose.msra.mxu0 0.0
  %87 = vmatprep.subr.mxu0 0.0
  %88 = vmatpush1.xpose.msra.mxu0 0.0
  %89 = vmatprep.subr.mxu0 0.0
  %90 = vmatpush1.xpose.msra.mxu0 0.0
  %91 = vmatprep.subr.mxu0 0.0
  %92 = vmatpush1.xpose.msra.mxu0 0.0
  %93 = vmatprep.subr.mxu0 0.0
  %94 = vmatpush1.xpose.msra.mxu0 0.0
  %95 = vmatprep.subr.mxu0 0.0
  %96 = vmatpush1.xpose.msra.mxu0 0.0
  %97 = vmatprep.subr.mxu0 0.0
  %98 = vmatpush1.xpose.msra.mxu0 0.0
  %99 = vmatprep.subr.mxu0 0.0
  %100 = vmatpush1.xpose.msra.mxu0 0.0
  %101 = vmatprep.subr.mxu0 0.0
  %102 = vmatpush1.xpose.msra.mxu0 0.0
  %103 = vmatprep.subr.mxu0 0.0
  %104 = vmatpush1.xpose.msra.mxu0 0.0
  %105 = vmatprep.subr.mxu0 0.0
  %106 = vmatpush1.xpose.msra.mxu0 0.0
  %107 = vmatprep.subr.mxu0 0.0
  %108 = vmatpush1.xpose.msra.mxu0 0.0
  %109 = vmatprep.subr.mxu0 0.0
  %110 = vmatpush1.xpose.msra.mxu0 0.0
  %111 = vmatprep.subr.mxu0 0.0
  %112 = vmatpush1.xpose.msra.mxu0 0.0
  %113 = vmatprep.subr.mxu0 0.0
  %114 = vmatpush1.xpose.msra.mxu0 0.0
  %115 = vmatprep.subr.mxu0 0.0
  %116 = vmatpush1.xpose.msra.mxu0 0.0
  %117 = vmatprep.subr.mxu0 0.0
  %118 = vmatpush1.xpose.msra.mxu0 0.0
  %119 = vmatprep.subr.mxu0 0.0
  %120 = vmatpush1.xpose.msra.mxu0 0.0
  %121 = vmatprep.subr.mxu0 0.0
  %122 = vmatpush1.xpose.msra.mxu0 0.0
  %123 = vmatprep.subr.mxu0 0.0
  %124 = vmatpush1.xpose.msra.mxu0 0.0
  %125 = vmatprep.subr.mxu0 0.0
  %126 = vmatpush1.xpose.msra.mxu0 0.0
  %127 = vmatprep.subr.mxu0 0.0
  %128 = vmatpush1.xpose.msra.mxu0 0.0
  %129 = vmatprep.subr.mxu0 0.0
  %130 = vmatpush1.xpose.msra.mxu0 0.0
  %131 = vmatprep.subr.mxu0 0.0
  %132 = vmatpush1.xpose.msra.mxu0 0.0
  %133 = vmatprep.mubr.f32.mxu0 0.0
  %134 = vmatmul.mubr.f32.gmra.mrb[0].mxu0 %v34
  %v135 = vpop.f32.mrb[0].mxu0
  %v136 = vadd.f32 0.0, %v135
  %v137 = vpop.f32.mrb[0].mxu0
  %138 = vmatprep.mubr.f32.mxu0 0.0
  %139 = vmatmul.mubr.f32.gmra.mrb[0].mxu0 %v37
  %v140 = vpop.f32.mrb[0].mxu0
  %v141 = vadd.f32 0.0, %v140
  %v142 = vpop.f32.mrb[0].mxu0
  %143 = vmatprep.mubr.f32.mxu0 0.0
  %144 = vmatmul.mubr.f32.gmra.mrb[0].mxu0 %v40
  %v145 = vpop.f32.mrb[0].mxu0
  %v146 = vadd.f32 0.0, %v145
  %v147 = vpop.f32.mrb[0].mxu0
  %148 = vmatprep.mubr.f32.mxu0 0.0
  %149 = vmatmul.mubr.f32.gmra.mrb[0].mxu0 %v43
  %v150 = vpop.f32.mrb[0].mxu0
  %v151 = vadd.f32 0.0, %v150
  %v152 = vpop.f32.mrb[0].mxu0
  %153 = vmatprep.mubr.f32.mxu0 0.0
  %154 = vmatmul.mubr.f32.gmra.mrb[0].mxu0 %v46
  %v155 = vpop.f32.mrb[0].mxu0
  %v156 = vadd.f32 0.0, %v155
  %v157 = vpop.f32.mrb[0].mxu0
  %158 = vmatprep.mubr.f32.mxu0 0.0
  %159 = vmatmul.mubr.f32.gmra.mrb[0].mxu0 %v49
  %v160 = vpop.f32.mrb[0].mxu0
  %v161 = vadd.f32 0.0, %v160
  %v162 = vpop.f32.mrb[0].mxu0
  %163 = vmatprep.mubr.f32.mxu0 0.0
  %164 = vmatmul.mubr.f32.gmra.mrb[0].mxu0 %v52
  %v165 = vpop.f32.mrb[0].mxu0
  %v166 = vadd.f32 0.0, %v165
  %v167 = vpop.f32.mrb[0].mxu0
  %168 = vmatprep.mubr.f32.mxu0 0.0
  %169 = vmatmul.mubr.f32.gmra.mrb[0].mxu0 %v55
  %v170 = vpop.f32.mrb[0].mxu0
  %v171 = vadd.f32 0.0, %v170
  %v172 = vpop.f32.mrb[0].mxu0
  %173 = vdwg.mxu0
  %v174 = vld [vmem:[%s2] sm:$0xff]
  %v175 = vld [vmem:[%s2 + $0x8] sm:$0xff]
  %v176 = vld [vmem:[%s2 + $0x10] sm:$0xff]
  %v177 = vld [vmem:[%s2 + $0x18] sm:$0xff]
  %v179 = vsel %vm32, %v174, 0
  %v182 = vsel %vm32, %v175, 0
  %v185 = vsel %vm32, %v176, 0
  %v188 = vsel %vm32, %v177, 0
  %190 = vmatprep.subr.mxu0 0.0
  %191 = vmatpush1.xpose.msra.mxu0 %v179
  %192 = vmatprep.subr.mxu0 0.0
  %193 = vmatpush1.xpose.msra.mxu0 %v182
  %194 = vmatprep.subr.mxu0 0.0
  %195 = vmatpush1.xpose.msra.mxu0 %v185
  %196 = vmatprep.subr.mxu0 0.0
  %197 = vmatpush1.xpose.msra.mxu0 %v188
  %198 = vmatprep.subr.mxu0 0.0
  %199 = vmatpush1.xpose.msra.mxu0 0.0
  %200 = vmatprep.subr.mxu0 0.0
  %201 = vmatpush1.xpose.msra.mxu0 0.0
  %202 = vmatprep.subr.mxu0 0.0
  %203 = vmatpush1.xpose.msra.mxu0 0.0
  %204 = vmatprep.subr.mxu0 0.0
  %205 = vmatpush1.xpose.msra.mxu0 0.0
  %206 = vmatprep.subr.mxu0 0.0
  %207 = vmatpush1.xpose.msra.mxu0 0.0
  %208 = vmatprep.subr.mxu0 0.0
  %209 = vmatpush1.xpose.msra.mxu0 0.0
  %210 = vmatprep.subr.mxu0 0.0
  %211 = vmatpush1.xpose.msra.mxu0 0.0
  %212 = vmatprep.subr.mxu0 0.0
  %213 = vmatpush1.xpose.msra.mxu0 0.0
  %214 = vmatprep.subr.mxu0 0.0
  %215 = vmatpush1.xpose.msra.mxu0 0.0
  %216 = vmatprep.subr.mxu0 0.0
  %217 = vmatpush1.xpose.msra.mxu0 0.0
  %218 = vmatprep.subr.mxu0 0.0
  %219 = vmatpush1.xpose.msra.mxu0 0.0
  %220 = vmatprep.subr.mxu0 0.0
  %221 = vmatpush1.xpose.msra.mxu0 0.0
  %222 = vmatprep.subr.mxu0 0.0
  %223 = vmatpush1.xpose.msra.mxu0 0.0
  %224 = vmatprep.subr.mxu0 0.0
  %225 = vmatpush1.xpose.msra.mxu0 0.0
  %226 = vmatprep.subr.mxu0 0.0
  %227 = vmatpush1.xpose.msra.mxu0 0.0
  %228 = vmatprep.subr.mxu0 0.0
  %229 = vmatpush1.xpose.msra.mxu0 0.0
  %230 = vmatprep.subr.mxu0 0.0
  %231 = vmatpush1.xpose.msra.mxu0 0.0
  %232 = vmatprep.subr.mxu0 0.0
  %233 = vmatpush1.xpose.msra.mxu0 0.0
  %234 = vmatprep.subr.mxu0 0.0
  %235 = vmatpush1.xpose.msra.mxu0 0.0
  %236 = vmatprep.subr.mxu0 0.0
  %237 = vmatpush1.xpose.msra.mxu0 0.0
  %238 = vmatprep.subr.mxu0 0.0
  %239 = vmatpush1.xpose.msra.mxu0 0.0
  %240 = vmatprep.subr.mxu0 0.0
  %241 = vmatpush1.xpose.msra.mxu0 0.0
  %242 = vmatprep.subr.mxu0 0.0
  %243 = vmatpush1.xpose.msra.mxu0 0.0
  %244 = vmatprep.subr.mxu0 0.0
  %245 = vmatpush1.xpose.msra.mxu0 0.0
  %246 = vmatprep.subr.mxu0 0.0
  %247 = vmatpush1.xpose.msra.mxu0 0.0
  %248 = vmatprep.subr.mxu0 0.0
  %249 = vmatpush1.xpose.msra.mxu0 0.0
  %250 = vmatprep.subr.mxu0 0.0
  %251 = vmatpush1.xpose.msra.mxu0 0.0
  %252 = vmatprep.subr.mxu0 0.0
  %253 = vmatpush1.xpose.msra.mxu0 0.0
  %254 = vmatprep.mubr.f32.mxu0 0.0
  %255 = vmatmul.mubr.f32.gmra.mrb[0].mxu0 %v34
  %v256 = vpop.f32.mrb[0].mxu0
  %v257 = vadd.f32 0.0, %v256
  %v258 = vpop.f32.mrb[0].mxu0
  %259 = vmatprep.mubr.f32.mxu0 0.0
  %260 = vmatmul.mubr.f32.gmra.mrb[0].mxu0 %v37
  %v261 = vpop.f32.mrb[0].mxu0
  %v262 = vadd.f32 0.0, %v261
  %v263 = vpop.f32.mrb[0].mxu0
  %264 = vmatprep.mubr.f32.mxu0 0.0
  %265 = vmatmul.mubr.f32.gmra.mrb[0].mxu0 %v40
  %v266 = vpop.f32.mrb[0].mxu0
  %v267 = vadd.f32 0.0, %v266
  %v268 = vpop.f32.mrb[0].mxu0
  %269 = vmatprep.mubr.f32.mxu0 0.0
  %270 = vmatmul.mubr.f32.gmra.mrb[0].mxu0 %v43
  %v271 = vpop.f32.mrb[0].mxu0
  %v272 = vadd.f32 0.0, %v271
  %v273 = vpop.f32.mrb[0].mxu0
  %274 = vmatprep.mubr.f32.mxu0 0.0
  %275 = vmatmul.mubr.f32.gmra.mrb[0].mxu0 %v46
  %v276 = vpop.f32.mrb[0].mxu0
  %v277 = vadd.f32 0.0, %v276
  %v278 = vpop.f32.mrb[0].mxu0
  %279 = vmatprep.mubr.f32.mxu0 0.0
  %280 = vmatmul.mubr.f32.gmra.mrb[0].mxu0 %v49
  %v281 = vpop.f32.mrb[0].mxu0
  %v282 = vadd.f32 0.0, %v281
  %v283 = vpop.f32.mrb[0].mxu0
  %284 = vmatprep.mubr.f32.mxu0 0.0
  %285 = vmatmul.mubr.f32.gmra.mrb[0].mxu0 %v52
  %v286 = vpop.f32.mrb[0].mxu0
  %v287 = vadd.f32 0.0, %v286
  %v288 = vpop.f32.mrb[0].mxu0
  %289 = vmatprep.mubr.f32.mxu0 0.0
  %290 = vmatmul.mubr.f32.gmra.mrb[0].mxu0 %v55
  %v291 = vpop.f32.mrb[0].mxu0
  %v292 = vadd.f32 0.0, %v291
  %v293 = vpop.f32.mrb[0].mxu0
  %294 = vdwg.mxu0
  %vm295 = vcmp.gt.f32.partialorder %v136, 0.0
  %vm296 = vcmp.gt.f32.partialorder %v141, 0.0
  %vm297 = vcmp.gt.f32.partialorder %v146, 0.0
  %vm298 = vcmp.gt.f32.partialorder %v151, 0.0
  %vm299 = vcmp.gt.f32.partialorder %v156, 0.0
  %vm300 = vcmp.gt.f32.partialorder %v161, 0.0
  %vm301 = vcmp.gt.f32.partialorder %v166, 0.0
  %vm302 = vcmp.gt.f32.partialorder %v171, 0.0
  %v303 = vsel %vm295, %v136, 0.0
  %v304 = vsel %vm296, %v141, 0.0
  %v305 = vsel %vm297, %v146, 0.0
  %v306 = vsel %vm298, %v151, 0.0
  %v307 = vsel %vm299, %v156, 0.0
  %v308 = vsel %vm300, %v161, 0.0
  %v309 = vsel %vm301, %v166, 0.0
  %v310 = vsel %vm302, %v171, 0.0
  %v311 = vsel %vm295, %v257, 0.0
  %v312 = vsel %vm296, %v262, 0.0
  %v313 = vsel %vm297, %v267, 0.0
  %v314 = vsel %vm298, %v272, 0.0
  %v315 = vsel %vm299, %v277, 0.0
  %v316 = vsel %vm300, %v282, 0.0
  %v317 = vsel %vm301, %v287, 0.0
  %v318 = vsel %vm302, %v292, 0.0
  %v319 = vld [vmem:[%s3] sm:$0x3]
  %v320 = vld [vmem:[%s4] sm:$0x3]
  %vm321 = vcmask 261120
  %v323 = vsel %vm321, %v311, 0
  %v326 = vsel %vm321, %v312, 0
  %v329 = vsel %vm321, %v313, 0
  %v332 = vsel %vm321, %v314, 0
  %v335 = vsel %vm321, %v315, 0
  %v338 = vsel %vm321, %v316, 0
  %v341 = vsel %vm321, %v317, 0
  %v344 = vsel %vm321, %v318, 0
  %v347 = vsel %vm321, %v320, 0
  %349 = vmatprep.subr.mxu0 0.0
  %350 = vmatpush1.xpose.msra.mxu0 %v347
  %351 = vmatprep.subr.mxu0 0.0
  %352 = vmatpush1.xpose.msra.mxu0 0.0
  %353 = vmatprep.subr.mxu0 0.0
  %354 = vmatpush1.xpose.msra.mxu0 0.0
  %355 = vmatprep.subr.mxu0 0.0
  %356 = vmatpush1.xpose.msra.mxu0 0.0
  %357 = vmatprep.subr.mxu0 0.0
  %358 = vmatpush1.xpose.msra.mxu0 0.0
  %359 = vmatprep.subr.mxu0 0.0
  %360 = vmatpush1.xpose.msra.mxu0 0.0
  %361 = vmatprep.subr.mxu0 0.0
  %362 = vmatpush1.xpose.msra.mxu0 0.0
  %363 = vmatprep.subr.mxu0 0.0
  %364 = vmatpush1.xpose.msra.mxu0 0.0
  %365 = vmatprep.subr.mxu0 0.0
  %366 = vmatpush1.xpose.msra.mxu0 0.0
  %367 = vmatprep.subr.mxu0 0.0
  %368 = vmatpush1.xpose.msra.mxu0 0.0
  %369 = vmatprep.subr.mxu0 0.0
  %370 = vmatpush1.xpose.msra.mxu0 0.0
  %371 = vmatprep.subr.mxu0 0.0
  %372 = vmatpush1.xpose.msra.mxu0 0.0
  %373 = vmatprep.subr.mxu0 0.0
  %374 = vmatpush1.xpose.msra.mxu0 0.0
  %375 = vmatprep.subr.mxu0 0.0
  %376 = vmatpush1.xpose.msra.mxu0 0.0
  %377 = vmatprep.subr.mxu0 0.0
  %378 = vmatpush1.xpose.msra.mxu0 0.0
  %379 = vmatprep.subr.mxu0 0.0
  %380 = vmatpush1.xpose.msra.mxu0 0.0
  %381 = vmatprep.subr.mxu0 0.0
  %382 = vmatpush1.xpose.msra.mxu0 0.0
  %383 = vmatprep.subr.mxu0 0.0
  %384 = vmatpush1.xpose.msra.mxu0 0.0
  %385 = vmatprep.subr.mxu0 0.0
  %386 = vmatpush1.xpose.msra.mxu0 0.0
  %387 = vmatprep.subr.mxu0 0.0
  %388 = vmatpush1.xpose.msra.mxu0 0.0
  %389 = vmatprep.subr.mxu0 0.0
  %390 = vmatpush1.xpose.msra.mxu0 0.0
  %391 = vmatprep.subr.mxu0 0.0
  %392 = vmatpush1.xpose.msra.mxu0 0.0
  %393 = vmatprep.subr.mxu0 0.0
  %394 = vmatpush1.xpose.msra.mxu0 0.0
  %395 = vmatprep.subr.mxu0 0.0
  %396 = vmatpush1.xpose.msra.mxu0 0.0
  %397 = vmatprep.subr.mxu0 0.0
  %398 = vmatpush1.xpose.msra.mxu0 0.0
  %399 = vmatprep.subr.mxu0 0.0
  %400 = vmatpush1.xpose.msra.mxu0 0.0
  %401 = vmatprep.subr.mxu0 0.0
  %402 = vmatpush1.xpose.msra.mxu0 0.0
  %403 = vmatprep.subr.mxu0 0.0
  %404 = vmatpush1.xpose.msra.mxu0 0.0
  %405 = vmatprep.subr.mxu0 0.0
  %406 = vmatpush1.xpose.msra.mxu0 0.0
  %407 = vmatprep.subr.mxu0 0.0
  %408 = vmatpush1.xpose.msra.mxu0 0.0
  %409 = vmatprep.subr.mxu0 0.0
  %410 = vmatpush1.xpose.msra.mxu0 0.0
  %411 = vmatprep.subr.mxu0 0.0
  %412 = vmatpush1.xpose.msra.mxu0 0.0
  %413 = vmatprep.mubr.f32.mxu0 0.0
  %414 = vmatmul.mubr.f32.gmra.mrb[0].mxu0 %v323
  %v415 = vpop.f32.mrb[0].mxu0
  %v416 = vadd.f32 0.0, %v415
  %v417 = vpop.f32.mrb[0].mxu0
  %418 = vmatprep.mubr.f32.mxu0 0.0
  %419 = vmatmul.mubr.f32.gmra.mrb[0].mxu0 %v326
  %v420 = vpop.f32.mrb[0].mxu0
  %v421 = vadd.f32 0.0, %v420
  %v422 = vpop.f32.mrb[0].mxu0
  %423 = vmatprep.mubr.f32.mxu0 0.0
  %424 = vmatmul.mubr.f32.gmra.mrb[0].mxu0 %v329
  %v425 = vpop.f32.mrb[0].mxu0
  %v426 = vadd.f32 0.0, %v425
  %v427 = vpop.f32.mrb[0].mxu0
  %428 = vmatprep.mubr.f32.mxu0 0.0
  %429 = vmatmul.mubr.f32.gmra.mrb[0].mxu0 %v332
  %v430 = vpop.f32.mrb[0].mxu0
  %v431 = vadd.f32 0.0, %v430
  %v432 = vpop.f32.mrb[0].mxu0
  %433 = vmatprep.mubr.f32.mxu0 0.0
  %434 = vmatmul.mubr.f32.gmra.mrb[0].mxu0 %v335
  %v435 = vpop.f32.mrb[0].mxu0
  %v436 = vadd.f32 0.0, %v435
  %v437 = vpop.f32.mrb[0].mxu0
  %438 = vmatprep.mubr.f32.mxu0 0.0
  %439 = vmatmul.mubr.f32.gmra.mrb[0].mxu0 %v338
  %v440 = vpop.f32.mrb[0].mxu0
  %v441 = vadd.f32 0.0, %v440
  %v442 = vpop.f32.mrb[0].mxu0
  %443 = vmatprep.mubr.f32.mxu0 0.0
  %444 = vmatmul.mubr.f32.gmra.mrb[0].mxu0 %v341
  %v445 = vpop.f32.mrb[0].mxu0
  %v446 = vadd.f32 0.0, %v445
  %v447 = vpop.f32.mrb[0].mxu0
  %448 = vmatprep.mubr.f32.mxu0 0.0
  %449 = vmatmul.mubr.f32.gmra.mrb[0].mxu0 %v344
  %v450 = vpop.f32.mrb[0].mxu0
  %v451 = vadd.f32 0.0, %v450
  %v452 = vpop.f32.mrb[0].mxu0
  %453 = vdwg.mxu0
  %v455 = vsel %vm321, %v303, 0
  %v458 = vsel %vm321, %v304, 0
  %v461 = vsel %vm321, %v305, 0
  %v464 = vsel %vm321, %v306, 0
  %v467 = vsel %vm321, %v307, 0
  %v470 = vsel %vm321, %v308, 0
  %v473 = vsel %vm321, %v309, 0
  %v476 = vsel %vm321, %v310, 0
  %v479 = vsel %vm321, %v319, 0
  %481 = vmatprep.subr.mxu0 0.0
  %482 = vmatpush1.xpose.msra.mxu0 %v479
  %483 = vmatprep.subr.mxu0 0.0
  %484 = vmatpush1.xpose.msra.mxu0 0.0
  %485 = vmatprep.subr.mxu0 0.0
  %486 = vmatpush1.xpose.msra.mxu0 0.0
  %487 = vmatprep.subr.mxu0 0.0
  %488 = vmatpush1.xpose.msra.mxu0 0.0
  %489 = vmatprep.subr.mxu0 0.0
  %490 = vmatpush1.xpose.msra.mxu0 0.0
  %491 = vmatprep.subr.mxu0 0.0
  %492 = vmatpush1.xpose.msra.mxu0 0.0
  %493 = vmatprep.subr.mxu0 0.0
  %494 = vmatpush1.xpose.msra.mxu0 0.0
  %495 = vmatprep.subr.mxu0 0.0
  %496 = vmatpush1.xpose.msra.mxu0 0.0
  %497 = vmatprep.subr.mxu0 0.0
  %498 = vmatpush1.xpose.msra.mxu0 0.0
  %499 = vmatprep.subr.mxu0 0.0
  %500 = vmatpush1.xpose.msra.mxu0 0.0
  %501 = vmatprep.subr.mxu0 0.0
  %502 = vmatpush1.xpose.msra.mxu0 0.0
  %503 = vmatprep.subr.mxu0 0.0
  %504 = vmatpush1.xpose.msra.mxu0 0.0
  %505 = vmatprep.subr.mxu0 0.0
  %506 = vmatpush1.xpose.msra.mxu0 0.0
  %507 = vmatprep.subr.mxu0 0.0
  %508 = vmatpush1.xpose.msra.mxu0 0.0
  %509 = vmatprep.subr.mxu0 0.0
  %510 = vmatpush1.xpose.msra.mxu0 0.0
  %511 = vmatprep.subr.mxu0 0.0
  %512 = vmatpush1.xpose.msra.mxu0 0.0
  %513 = vmatprep.subr.mxu0 0.0
  %514 = vmatpush1.xpose.msra.mxu0 0.0
  %515 = vmatprep.subr.mxu0 0.0
  %516 = vmatpush1.xpose.msra.mxu0 0.0
  %517 = vmatprep.subr.mxu0 0.0
  %518 = vmatpush1.xpose.msra.mxu0 0.0
  %519 = vmatprep.subr.mxu0 0.0
  %520 = vmatpush1.xpose.msra.mxu0 0.0
  %521 = vmatprep.subr.mxu0 0.0
  %522 = vmatpush1.xpose.msra.mxu0 0.0
  %523 = vmatprep.subr.mxu0 0.0
  %524 = vmatpush1.xpose.msra.mxu0 0.0
  %525 = vmatprep.subr.mxu0 0.0
  %526 = vmatpush1.xpose.msra.mxu0 0.0
  %527 = vmatprep.subr.mxu0 0.0
  %528 = vmatpush1.xpose.msra.mxu0 0.0
  %529 = vmatprep.subr.mxu0 0.0
  %530 = vmatpush1.xpose.msra.mxu0 0.0
  %531 = vmatprep.subr.mxu0 0.0
  %532 = vmatpush1.xpose.msra.mxu0 0.0
  %533 = vmatprep.subr.mxu0 0.0
  %534 = vmatpush1.xpose.msra.mxu0 0.0
  %535 = vmatprep.subr.mxu0 0.0
  %536 = vmatpush1.xpose.msra.mxu0 0.0
  %537 = vmatprep.subr.mxu0 0.0
  %538 = vmatpush1.xpose.msra.mxu0 0.0
  %539 = vmatprep.subr.mxu0 0.0
  %540 = vmatpush1.xpose.msra.mxu0 0.0
  %541 = vmatprep.subr.mxu0 0.0
  %542 = vmatpush1.xpose.msra.mxu0 0.0
  %543 = vmatprep.subr.mxu0 0.0
  %544 = vmatpush1.xpose.msra.mxu0 0.0
  %545 = vmatprep.mubr.f32.mxu0 0.0
  %546 = vmatmul.mubr.f32.gmra.mrb[0].mxu0 %v455
  %v547 = vpop.f32.mrb[0].mxu0
  %v548 = vadd.f32 %v416, %v547
  %v549 = vpop.f32.mrb[0].mxu0
  %550 = vmatprep.mubr.f32.mxu0 0.0
  %551 = vmatmul.mubr.f32.gmra.mrb[0].mxu0 %v458
  %v552 = vpop.f32.mrb[0].mxu0
  %v553 = vadd.f32 %v421, %v552
  %v554 = vpop.f32.mrb[0].mxu0
  %555 = vmatprep.mubr.f32.mxu0 0.0
  %556 = vmatmul.mubr.f32.gmra.mrb[0].mxu0 %v461
  %v557 = vpop.f32.mrb[0].mxu0
  %v558 = vadd.f32 %v426, %v557
  %v559 = vpop.f32.mrb[0].mxu0
  %560 = vmatprep.mubr.f32.mxu0 0.0
  %561 = vmatmul.mubr.f32.gmra.mrb[0].mxu0 %v464
  %v562 = vpop.f32.mrb[0].mxu0
  %v563 = vadd.f32 %v431, %v562
  %v564 = vpop.f32.mrb[0].mxu0
  %565 = vmatprep.mubr.f32.mxu0 0.0
  %566 = vmatmul.mubr.f32.gmra.mrb[0].mxu0 %v467
  %v567 = vpop.f32.mrb[0].mxu0
  %v568 = vadd.f32 %v436, %v567
  %v569 = vpop.f32.mrb[0].mxu0
  %570 = vmatprep.mubr.f32.mxu0 0.0
  %571 = vmatmul.mubr.f32.gmra.mrb[0].mxu0 %v470
  %v572 = vpop.f32.mrb[0].mxu0
  %v573 = vadd.f32 %v441, %v572
  %v574 = vpop.f32.mrb[0].mxu0
  %575 = vmatprep.mubr.f32.mxu0 0.0
  %576 = vmatmul.mubr.f32.gmra.mrb[0].mxu0 %v473
  %v577 = vpop.f32.mrb[0].mxu0
  %v578 = vadd.f32 %v446, %v577
  %v579 = vpop.f32.mrb[0].mxu0
  %580 = vmatprep.mubr.f32.mxu0 0.0
  %581 = vmatmul.mubr.f32.gmra.mrb[0].mxu0 %v476
  %v582 = vpop.f32.mrb[0].mxu0
  %v583 = vadd.f32 %v451, %v582
  %v584 = vpop.f32.mrb[0].mxu0
  %585 = vdwg.mxu0
  %vm586 = vcmask 15360
  %587 = vst.msk [vmem:[%s5] sm:$0xff] %vm586, %v548
  %588 = vst.msk [vmem:[%s5 + $0x8] sm:$0xff] %vm586, %v553
  %589 = vst.msk [vmem:[%s5 + $0x10] sm:$0xff] %vm586, %v558
  %590 = vst.msk [vmem:[%s5 + $0x18] sm:$0xff] %vm586, %v563
  %591 = vst.msk [vmem:[%s5 + $0x20] sm:$0xff] %vm586, %v568
  %592 = vst.msk [vmem:[%s5 + $0x28] sm:$0xff] %vm586, %v573
  %593 = vst.msk [vmem:[%s5 + $0x30] sm:$0xff] %vm586, %v578
  %594 = vst.msk [vmem:[%s5 + $0x38] sm:$0xff] %vm586, %v583
  // Predicated region
  $region22: #{tpu_custom_call.1} parent=0 // pred_check
    _
  $region23: #{tpu_custom_call.1} parent=0 // pred_check_branch
    %596 = sbr.rel (0) target = $region25
  $region24: #{tpu_custom_call.1} parent=0 // pred_region
    _
  $region25: #{tpu_custom_call.1} parent=0 // pred_fallthru
    _
  // Predicated region
  $region26: #{tpu_custom_call.1} parent=0 // pred_check
    _
  $region27: #{tpu_custom_call.1} parent=0 // pred_check_branch
    %598 = sbr.rel (0) target = $region29
  $region28: #{tpu_custom_call.1} parent=0 // pred_region
    _
  $region29: #{tpu_custom_call.1} parent=0 // pred_fallthru
    _

</llo_original>
